<compile_context>
chip_gen: v7x
topology: tpu7x:2x2x1
jax: 0.10.0
libtpu: 0.0.40
codegen_flags: <defaults>
</compile_context>

<pallas_src>
import functools

import jax
import jax.numpy as jnp
from jax import lax
from jax.experimental import pallas as pl
from jax.experimental.pallas import tpu as pltpu

VMEM = pl.BlockSpec(memory_space=pltpu.MemorySpace.VMEM)


# ----------------------------- in-kernel helpers ----------------------------

def _gelu(x):
    # TODO(synk): tanh-approx GELU; PyTorch/HF BERT default is the exact erf form.
    return 0.5 * x * (1.0 + jnp.tanh(0.7978845608028654 * (x + 0.044715 * x * x * x)))


def _layernorm(x, g, b, eps):
    mean = jnp.mean(x, axis=-1, keepdims=True)
    xc = x - mean
    var = jnp.mean(xc * xc, axis=-1, keepdims=True)
    return xc * lax.rsqrt(var + eps) * g + b


# ------------------------------- Pallas kernels ------------------------------

def _ln_kernel(x_ref, g_ref, b_ref, o_ref, *, eps):
    x = x_ref[...].astype(jnp.float32)
    y = _layernorm(x, g_ref[...].astype(jnp.float32), b_ref[...].astype(jnp.float32), eps)
    o_ref[...] = y.astype(o_ref.dtype)


def layer_norm(x2d, gamma, beta, eps=1e-12):
    m, h = x2d.shape
    return pl.pallas_call(
        functools.partial(_ln_kernel, eps=eps),
        out_shape=jax.ShapeDtypeStruct((m, h), x2d.dtype),
        in_specs=[VMEM, VMEM, VMEM],
        out_specs=VMEM,
    )(x2d, gamma.reshape(1, h), beta.reshape(1, h))


def _bert_layer_kernel(x_ref, wqkv_ref, bqkv_ref, wo_ref, bo_ref,
                       ln1g_ref, ln1b_ref, wi_ref, bi_ref, wo2_ref, bo2_ref,
                       ln2g_ref, ln2b_ref, o_ref, ctx_ref,
                       *, batch, seq, num_heads, head_dim, eps):
    """One full transformer block, everything VMEM-resident."""
    h = num_heads * head_dim
    x = x_ref[...].astype(jnp.float32)                                   # [B*S, H]

    # fused QKV projection: one [B*S, H] @ [H, 3H] matmul
    qkv = jnp.dot(x, wqkv_ref[...].astype(jnp.float32),
                  preferred_element_type=jnp.float32) + bqkv_ref[...].astype(jnp.float32)

    scale = 1.0 / (head_dim ** 0.5)
    row = lax.broadcasted_iota(jnp.int32, (seq, seq), 0)
    col = lax.broadcasted_iota(jnp.int32, (seq, seq), 1)
    causal = col <= row                                                  # autoregressive mask

    # per-(batch, head) attention via static slices; fully unrolled, no grid steps
    for b in range(batch):
        r0 = b * seq
        for hd in range(num_heads):
            c0 = hd * head_dim
            q = qkv[r0:r0 + seq, c0:c0 + head_dim]                       # [S, Dh]
            k = qkv[r0:r0 + seq, h + c0:h + c0 + head_dim]
            v = qkv[r0:r0 + seq, 2 * h + c0:2 * h + c0 + head_dim]
            s = jnp.dot(q, k.T, preferred_element_type=jnp.float32) * scale
            s = jnp.where(causal, s, -1e30)
            m = jnp.max(s, axis=-1, keepdims=True)
            p = jnp.exp(s - m)
            p = p * pl.reciprocal(jnp.sum(p, axis=-1, keepdims=True), approx=True)
            ctx_ref[r0:r0 + seq, c0:c0 + head_dim] = jnp.dot(
                p, v, preferred_element_type=jnp.float32)

    attn = jnp.dot(ctx_ref[...], wo_ref[...].astype(jnp.float32),
                   preferred_element_type=jnp.float32) + bo_ref[...].astype(jnp.float32)

    # residual + LN1 (fused)
    x1 = _layernorm(x + attn, ln1g_ref[...].astype(jnp.float32),
                    ln1b_ref[...].astype(jnp.float32), eps)

    # FFN + GELU + residual + LN2 (fused)
    ff = _gelu(jnp.dot(x1, wi_ref[...].astype(jnp.float32),
                       preferred_element_type=jnp.float32) + bi_ref[...].astype(jnp.float32))
    ff = jnp.dot(ff, wo2_ref[...].astype(jnp.float32),
                 preferred_element_type=jnp.float32) + bo2_ref[...].astype(jnp.float32)
    x2 = _layernorm(x1 + ff, ln2g_ref[...].astype(jnp.float32),
                    ln2b_ref[...].astype(jnp.float32), eps)
    o_ref[...] = x2.astype(o_ref.dtype)


def bert_layer(x2d, lp, *, batch, seq, num_heads, eps=1e-12):
    n, h = x2d.shape
    head_dim = h // num_heads
    kernel = functools.partial(_bert_layer_kernel, batch=batch, seq=seq,
                               num_heads=num_heads, head_dim=head_dim, eps=eps)
    return pl.pallas_call(
        kernel,
        out_shape=jax.ShapeDtypeStruct((n, h), x2d.dtype),
        in_specs=[VMEM] * 13,
        out_specs=VMEM,
        scratch_shapes=[pltpu.VMEM((n, h), jnp.float32)],   # attention context buffer
    )(x2d,
      lp["wqkv"], lp["bqkv"].reshape(1, -1),
      lp["wo"], lp["bo"].reshape(1, -1),
      lp["ln1_g"].reshape(1, -1), lp["ln1_b"].reshape(1, -1),
      lp["wi"], lp["bi"].reshape(1, -1),
      lp["wo2"], lp["bo2"].reshape(1, -1),
      lp["ln2_g"].reshape(1, -1), lp["ln2_b"].reshape(1, -1))


def _cls_kernel(x_ref, w_ref, b_ref, o_ref):
    x = x_ref[...].astype(jnp.float32)
    y = jnp.dot(x, w_ref[...].astype(jnp.float32),
                preferred_element_type=jnp.float32) + b_ref[...].astype(jnp.float32)
    o_ref[...] = y.astype(o_ref.dtype)


def classify(x2d, w, b):
    n = x2d.shape[0]
    v = w.shape[1]
    return pl.pallas_call(
        _cls_kernel,
        out_shape=jax.ShapeDtypeStruct((n, v), x2d.dtype),
        in_specs=[VMEM, VMEM, VMEM],
        out_specs=VMEM,
    )(x2d, w, b.reshape(1, v))


def _cls_ce_kernel(x_ref, w_ref, b_ref, tgt_ref, loss_ref):
    # classifier linear fused with cross-entropy(ignore_index=-1, mean reduction);
    # logits live only in VMEM.
    x = x_ref[...].astype(jnp.float32)
    logits = jnp.dot(x, w_ref[...].astype(jnp.float32),
                     preferred_element_type=jnp.float32) + b_ref[...].astype(jnp.float32)
    tgt = tgt_ref[...]                                    # [N, 1] int32
    n, v = logits.shape
    m = jnp.max(logits, axis=-1, keepdims=True)
    lse = jnp.log(jnp.sum(jnp.exp(logits - m), axis=-1, keepdims=True)) + m
    col = lax.broadcasted_iota(jnp.int32, (n, v), 1)
    picked = jnp.sum(jnp.where(col == tgt, logits, 0.0), axis=-1, keepdims=True)
    valid = (tgt != -1).astype(jnp.float32)               # ignore_index = -1 (as in the spec)
    per_tok = (lse - picked) * valid
    # Match PyTorch mean reduction: divide by #valid targets (NaN if all ignored).
    loss_ref[0, 0] = jnp.sum(per_tok) / jnp.sum(valid)


def classify_and_loss(x2d, w, b, targets1d):
    n = x2d.shape[0]
    v = w.shape[1]
    out = pl.pallas_call(
        _cls_ce_kernel,
        out_shape=jax.ShapeDtypeStruct((1, 1), jnp.float32),
        in_specs=[VMEM, VMEM, VMEM, VMEM],
        out_specs=VMEM,
    )(x2d, w, b.reshape(1, v), targets1d.reshape(n, 1).astype(jnp.int32))
    return out[0, 0]


# -------------------------------- model (glue) -------------------------------

CONFIG = dict(
    hidden_size=32,
    num_heads=4,
    num_layers=2,
    intermediate_size=64,
    vocab_size=128,
    max_length=8,
)


def init_params(key, cfg):
    h, v, mx, ff = cfg["hidden_size"], cfg["vocab_size"], cfg["max_length"], cfg["intermediate_size"]
    keys = iter(jax.random.split(key, 64))
    nrm = lambda shape: (0.02 * jax.random.normal(next(keys), shape)).astype(jnp.float32)
    params = dict(
        word_emb=nrm((v, h)),
        pos_emb=nrm((mx, h)),
        type_emb=nrm((2, h)),
        emb_ln_g=jnp.ones((h,), jnp.float32),
        emb_ln_b=jnp.zeros((h,), jnp.float32),
        cls_w=nrm((h, v)),
        cls_b=jnp.zeros((v,), jnp.float32),
        layers=[],
    )
    for _ in range(cfg["num_layers"]):
        params["layers"].append(dict(
            wqkv=nrm((h, 3 * h)), bqkv=jnp.zeros((3 * h,), jnp.float32),   # fused Q|K|V
            wo=nrm((h, h)), bo=jnp.zeros((h,), jnp.float32),
            ln1_g=jnp.ones((h,), jnp.float32), ln1_b=jnp.zeros((h,), jnp.float32),
            wi=nrm((h, ff)), bi=jnp.zeros((ff,), jnp.float32),
            wo2=nrm((ff, h)), bo2=jnp.zeros((h,), jnp.float32),
            ln2_g=jnp.ones((h,), jnp.float32), ln2_b=jnp.zeros((h,), jnp.float32),
        ))
    return params


def forward(params, x, target=None, cfg=CONFIG):
    b, s = x.shape
    h, nh, v = cfg["hidden_size"], cfg["num_heads"], cfg["vocab_size"]
    # embedding gather + sum is plain-JAX glue
    emb = (params["word_emb"][x]
           + params["pos_emb"][:s][None, :, :]
           + params["type_emb"][0][None, None, :])
    hid = layer_norm(emb.reshape(b * s, h), params["emb_ln_g"], params["emb_ln_b"])
    for lp in params["layers"]:
        hid = bert_layer(hid, lp, batch=b, seq=s, num_heads=nh)
    if target is not None:
        return classify_and_loss(hid, params["cls_w"], params["cls_b"], target.reshape(-1))
    return classify(hid, params["cls_w"], params["cls_b"]).reshape(b, s, v)


# ----------------------------------- main ------------------------------------

if __name__ == "__main__":
    key = jax.random.PRNGKey(0)
    k_param, k_x, k_t, k_mask = jax.random.split(key, 4)

    params = init_params(k_param, CONFIG)

    B, S, V = 2, CONFIG["max_length"], CONFIG["vocab_size"]
    x = jax.random.randint(k_x, (B, S), 0, V, dtype=jnp.int32)
    target = jax.random.randint(k_t, (B, S), 0, V, dtype=jnp.int32)
    # sprinkle some ignore_index (-1) positions, mirroring padded-label behaviour
    ignore = jax.random.bernoulli(k_mask, 0.25, (B, S))
    target = jnp.where(ignore, -1, target)

    predict = forward(params, x)          # [B, S, V] logits
    loss = forward(params, x, target)     # scalar cross-entropy loss

    jax.block_until_ready(predict)
    jax.block_until_ready(loss)

    assert predict.shape == (B, S, V)
    assert loss.shape == () and jnp.isfinite(loss)
    print("KERNEL_OK")
</pallas_src>

<mosaic_0001>
module attributes {stable_mosaic.version = 11 : i64} {
  func.func @_ln_kernel(%arg0: memref<16x32xf32, #tpu.memory_space<vmem>>, %arg1: memref<1x32xf32, #tpu.memory_space<vmem>>, %arg2: memref<1x32xf32, #tpu.memory_space<vmem>>, %arg3: memref<16x32xf32, #tpu.memory_space<vmem>>) attributes {dimension_semantics = [], scalar_prefetch = 0 : i64, scratch_operands = 0 : i64, tpu.core_type = #tpu.core_type<tc>} {
    %c0 = arith.constant 0 : index
    %c0_0 = arith.constant 0 : index
    %0 = vector.load %arg0[%c0, %c0_0] : memref<16x32xf32, #tpu.memory_space<vmem>>, vector<16x32xf32>
    %c0_1 = arith.constant 0 : index
    %c0_2 = arith.constant 0 : index
    %1 = vector.load %arg1[%c0_1, %c0_2] : memref<1x32xf32, #tpu.memory_space<vmem>>, vector<1x32xf32>
    %c0_3 = arith.constant 0 : index
    %c0_4 = arith.constant 0 : index
    %2 = vector.load %arg2[%c0_3, %c0_4] : memref<1x32xf32, #tpu.memory_space<vmem>>, vector<1x32xf32>
    %cst = arith.constant dense<0.000000e+00> : vector<16xf32>
    %3 = vector.multi_reduction <add>, %0, %cst [1] : vector<16x32xf32> to vector<16xf32>
    %4 = vector.shape_cast %3 : vector<16xf32> to vector<16x1xf32>
    %cst_5 = arith.constant 3.200000e+01 : f32
    %5 = vector.broadcast %cst_5 : f32 to vector<16x1xf32>
    %6 = arith.divf %4, %5 : vector<16x1xf32>
    %7 = vector.broadcast %6 : vector<16x1xf32> to vector<16x32xf32>
    %8 = arith.subf %0, %7 : vector<16x32xf32>
    %9 = arith.mulf %8, %8 : vector<16x32xf32>
    %cst_6 = arith.constant dense<0.000000e+00> : vector<16xf32>
    %10 = vector.multi_reduction <add>, %9, %cst_6 [1] : vector<16x32xf32> to vector<16xf32>
    %11 = vector.shape_cast %10 : vector<16xf32> to vector<16x1xf32>
    %cst_7 = arith.constant 3.200000e+01 : f32
    %12 = vector.broadcast %cst_7 : f32 to vector<16x1xf32>
    %13 = arith.divf %11, %12 : vector<16x1xf32>
    %cst_8 = arith.constant 9.99999996E-13 : f32
    %14 = vector.broadcast %cst_8 : f32 to vector<16x1xf32>
    %15 = arith.addf %13, %14 : vector<16x1xf32>
    %16 = math.rsqrt %15 : vector<16x1xf32>
    %17 = vector.broadcast %16 : vector<16x1xf32> to vector<16x32xf32>
    %18 = arith.mulf %8, %17 : vector<16x32xf32>
    %19 = vector.broadcast %1 : vector<1x32xf32> to vector<16x32xf32>
    %20 = arith.mulf %18, %19 : vector<16x32xf32>
    %21 = vector.broadcast %2 : vector<1x32xf32> to vector<16x32xf32>
    %22 = arith.addf %20, %21 : vector<16x32xf32>
    %c0_9 = arith.constant 0 : index
    %c0_10 = arith.constant 0 : index
    %23 = vector.load %arg3[%c0_9, %c0_10] : memref<16x32xf32, #tpu.memory_space<vmem>>, vector<16x32xf32>
    tpu.vector_store %arg3[%c0_9, %c0_10], %22 {strides = array<i32>} : memref<16x32xf32, #tpu.memory_space<vmem>>, vector<16x32xf32>,
    return
  }
}

</mosaic_0001>

<llo_original>
// kernel: tpu_custom_call.1
$region0: #{tpu_custom_call.1}
  #allocation0 [shape = 'u32[]', space=smem, size = 0x4, offset = 0x4, fixed_abs, tag = 'smem constant byte address 0x4 - core index']
  #allocation1 [shape = 'u32[144,128]{1,0:T(1,128)}', space=vmem, size = 0x12000, scoped, tag = 'internal scratch']
  %s0 = inlined_call_operand.hbm [shape: f32[16,32], index: 0, kind: input, shape index: {}]
  %s1 = inlined_call_operand.vmem [shape: f32[1,32], index: 1, kind: input, shape index: {}]
  %s2 = inlined_call_operand.vmem [shape: f32[1,32], index: 2, kind: input, shape index: {}]
  %s3 = inlined_call_operand.hbm [shape: f32[16,32], index: 3, kind: output, shape index: {}]
  %s4 = sld [smem:[#allocation0]]
  $region26: #{tpu_custom_call.1} parent=0
    _
  %s6 = ssub.s32 1, %s4
  %s7 = scalar_select 0, %s6, %s4
  $region1: #{tpu_custom_call.1} parent=0
    #allocation2 [shape = 'u8[8192]{0}', space=vmem, size = 0x2000, scoped, tag = 'input window, operand 0, single buffered']
    #allocation3 [shape = 's32[1]{0}', space=sflag, size = 0x4, scoped, tag = 'scoped memory for tpu_custom_call.1']
    #allocation4 [shape = 's32[1]{0}', space=sflag, size = 0x4, scoped, tag = 'scoped memory for tpu_custom_call.1']
    #allocation5 [shape = 'u8[8192]{0}', space=vmem, size = 0x2000, scoped, tag = 'output window, operand 0, single buffered']
    %8 = vsyncpa [#allocation3], 0
    %9 = vsyncpa [#allocation4], 0
    // Predicated region
    $region2: #{tpu_custom_call.1} parent=1 // pred_check
      _
    $region3: #{tpu_custom_call.1} parent=1 // pred_check_branch
      %11 = sbr.rel (0) target = $region5
    $region4: #{tpu_custom_call.1} parent=1 // pred_region
      %s13 = ssub.s32 256, 256
      %14 = vsyncadd [#allocation3], %s13
      %s15 = sshll.u32 [#allocation2], 4
      %s16 = int_to_ptr.vmem [resolvable:$true] %s15
      %21 = dma.hbm_to_vmem [thread:$0]  %s0, 256, %s16, [#allocation3], 128, 128, 8
    $region5: #{tpu_custom_call.1} parent=1 // pred_fallthru
      _
    // Predicated region
    $region6: #{tpu_custom_call.1} parent=1 // pred_check
      _
    $region7: #{tpu_custom_call.1} parent=1 // pred_check_branch
      %23 = sbr.rel (0) target = $region9
    $region8: #{tpu_custom_call.1} parent=1 // pred_region
      _
    $region9: #{tpu_custom_call.1} parent=1 // pred_fallthru
      _
    // Predicated region
    $region10: #{tpu_custom_call.1} parent=1 // pred_check
      _
    $region11: #{tpu_custom_call.1} parent=1 // pred_check_branch
      %25 = sbr.rel (0) target = $region13
    $region12: #{tpu_custom_call.1} parent=1 // pred_region
      _
    $region13: #{tpu_custom_call.1} parent=1 // pred_fallthru
      _
    // Predicated region
    $region14: #{tpu_custom_call.1} parent=1 // pred_check
      _
    $region15: #{tpu_custom_call.1} parent=1 // pred_check_branch
      %27 = sbr.rel (0) target = $region17
    $region16: #{tpu_custom_call.1} parent=1 // pred_region
      %28 = dma.done [#allocation3], 256
    $region17: #{tpu_custom_call.1} parent=1 // pred_fallthru
      _
    %v29 = vld [vmem:[#allocation2] sm:$0xff]
    %v30 = vld [vmem:[#allocation2 + $0x8] sm:$0xff]
    %v31 = vld [vmem:[%s1] sm:$0x1]
    %v32 = vld [vmem:[%s2] sm:$0x1]
    %vm33 = vcmask 261120
    %v34 = vsel %vm33, %v29, 0.0
    %35 = vadd.xlane.f32.xlu0 %v34
    %v36 = vpop.xlane.xlu0 %35
    %v37 = vsel %vm33, %v30, 0.0
    %38 = vadd.xlane.f32.xlu0 %v37
    %v39 = vpop.xlane.xlu0 %38
    %v40 = vrcp.pop 32.0
    %v41 = vmul.f32 %v36, %v40
    %v42 = vmul.f32 %v39, %v40
    %v43 = vsub.f32 %v29, %v41
    %v44 = vsub.f32 %v30, %v42
    %v45 = vmul.f32 %v43, %v43
    %v46 = vmul.f32 %v44, %v44
    %v47 = vsel %vm33, %v45, 0.0
    %48 = vadd.xlane.f32.xlu0 %v47
    %v49 = vpop.xlane.xlu0 %48
    %v50 = vsel %vm33, %v46, 0.0
    %51 = vadd.xlane.f32.xlu0 %v50
    %v52 = vpop.xlane.xlu0 %51
    %v53 = vmul.f32 %v49, %v40
    %v54 = vmul.f32 %v52, %v40
    %v55 = vadd.f32 %v53, 1e-12
    %v56 = vadd.f32 %v54, 1e-12
    %v57 = vrsqrt.pop %v55
    %v58 = vrsqrt.pop %v56
    %v59 = vmul.f32 %v43, %v57
    %v60 = vmul.f32 %v44, %v58
    %v62 = vlaneseq
    %v63 = vshrl.u32 %v62, 7
    %v64 = vsub.s32 0, %v63
    %v65 = vrot.slane %v31, %v64
    %v67 = vmul.f32 %v59, %v65
    %v68 = vmul.f32 %v60, %v65
    %v70 = vlaneseq
    %v71 = vshrl.u32 %v70, 7
    %v72 = vsub.s32 0, %v71
    %v73 = vrot.slane %v32, %v72
    %v75 = vadd.f32 %v67, %v73
    %v76 = vadd.f32 %v68, %v73
    %77 = vst.msk [vmem:[#allocation5] sm:$0xff] %vm33, %v75
    %78 = vst.msk [vmem:[#allocation5 + $0x8] sm:$0xff] %vm33, %v76
    // Predicated region
    $region18: #{tpu_custom_call.1} parent=1 // pred_check
      _
    $region19: #{tpu_custom_call.1} parent=1 // pred_check_branch
      %80 = sbr.rel (0) target = $region21
    $region20: #{tpu_custom_call.1} parent=1 // pred_region
      %s82 = ssub.s32 256, 256
      %83 = vsyncadd [#allocation4], %s82
      %s84 = sshll.u32 [#allocation5], 4
      %s85 = int_to_ptr.vmem [resolvable:$true] %s84
      %90 = dma.vmem_to_hbm [thread:$0]  %s85, 256, %s3, [#allocation4], 128, 128, 8
    $region21: #{tpu_custom_call.1} parent=1 // pred_fallthru
      _
    // Predicated region
    $region22: #{tpu_custom_call.1} parent=1 // pred_check
      _
    $region23: #{tpu_custom_call.1} parent=1 // pred_check_branch
      %92 = sbr.rel (0) target = $region25
    $region24: #{tpu_custom_call.1} parent=1 // pred_region
      %93 = dma.done [#allocation4], 256
    $region25: #{tpu_custom_call.1} parent=1 // pred_fallthru
      _
    %94 = vsyncpa [#allocation3], 1
    %95 = vsyncpa [#allocation4], 1

</llo_original>
